<compile_context>
chip_gen: v5e
topology: v5e:2x2
jax: 0.10.0
libtpu: 0.0.40
codegen_flags: <defaults>
</compile_context>

<pallas_src>
import functools
import math

import jax
import jax.numpy as jnp
from jax.experimental import pallas as pl
from jax.experimental.pallas import tpu as pltpu


def _round_up(x, m):
    return ((x + m - 1) // m) * m


def _gelu_tanh(x):
    # tanh-approximate GELU, computed in x.dtype (bf16 on v6e/v7x halves the
    # VALU/EUP cycles; keep f32 inputs on v5e, which lacks bf16 VPU/EUP).
    c = math.sqrt(2.0 / math.pi)
    return 0.5 * x * (1.0 + jnp.tanh(c * (x + 0.044715 * x * x * x)))


def _ffn_resident_kernel(x_ref, w1_ref, b1_ref, w2_ref, b2_ref, o_ref, *, gelu_dtype):
    # x_ref / o_ref: (TM, Dp) lane-dense row tile of tokens.
    # W1/b1/W2/b2: whole (padded) parameters, resident in VMEM (fetched once).
    h = jnp.dot(x_ref[...], w1_ref[...], preferred_element_type=jnp.float32)
    h = h + b1_ref[...].astype(jnp.float32)
    h = _gelu_tanh(h.astype(gelu_dtype))
    y = jnp.dot(h.astype(w2_ref.dtype), w2_ref[...], preferred_element_type=jnp.float32)
    y = y + b2_ref[...].astype(jnp.float32)
    o_ref[...] = y.astype(o_ref.dtype)


def _ffn_hslab_kernel(x_ref, w1_ref, b1_ref, w2_ref, b2_ref, o_ref, acc_ref, *, gelu_dtype):
    # Grid = (row tiles [parallel], H slabs [arbitrary/reduction]).
    # GELU is elementwise over H, so sum_k GELU(x@W1_k + b1_k) @ W2_k is exact.
    k = pl.program_id(1)

    @pl.when(k == 0)
    def _():
        acc_ref[...] = jnp.zeros_like(acc_ref)

    h = jnp.dot(x_ref[...], w1_ref[...], preferred_element_type=jnp.float32)
    h = h + b1_ref[...].astype(jnp.float32)
    h = _gelu_tanh(h.astype(gelu_dtype))
    acc_ref[...] += jnp.dot(h.astype(w2_ref.dtype), w2_ref[...],
                            preferred_element_type=jnp.float32)

    @pl.when(k == pl.num_programs(1) - 1)
    def _():
        o_ref[...] = (acc_ref[...] + b2_ref[...].astype(jnp.float32)).astype(o_ref.dtype)


def chunked_ffn(x, w1, b1, w2, b2, *, chunks=1, block_rows=512,
                prefer_bf16_matmul=False, force_hslab=False, hslab_th=None):
    """Pallas equivalent of Chunk(chunks, FeedForward, along_dim=seq)(x).

    `chunks` is accepted for API parity with the PyTorch module; because the
    wrapped fn is token-wise, chunk -> fn -> concat yields the same result for
    any `chunks`, so the hardware tiling is chosen independently.
    """
    B, S, D = x.shape
    Din, H = w1.shape
    assert Din == D and w2.shape == (H, D)
    assert b1.shape == (H,) and b2.shape == (D,)
    del chunks  # result is independent of the chunking of a token-wise fn

    out_dtype = x.dtype
    cdt = jnp.bfloat16 if (prefer_bf16_matmul and x.dtype == jnp.float32) else x.dtype
    # bf16 GELU relieves the VALU/EUP slot on v6e/v7x; f32 otherwise.
    gelu_dtype = jnp.bfloat16 if cdt == jnp.bfloat16 else jnp.float32
    # TODO(synk): force gelu_dtype=f32 on v5e deployments (no bf16 VPU/EUP).

    rows = B * S
    isz = jnp.dtype(cdt).itemsize

    # Only pad D / H when they are not already lane/MXU aligned (128-multiples).
    Dp = _round_up(D, 128)
    Hp = _round_up(H, 128)

    xf = x.reshape(rows, D).astype(cdt)          # reshape is free; no row padding
    if Dp != D:
        # Zero K-padding is exact; padded output columns are sliced off below.
        xf = jnp.zeros((rows, Dp), cdt).at[:, :D].set(xf)
    w1p = w1.astype(cdt)
    w2p = w2.astype(cdt)
    b1p = b1.astype(cdt).reshape(1, H)
    b2p = b2.astype(cdt).reshape(1, D)
    if Dp != D or Hp != H:
        w1p = jnp.zeros((Dp, Hp), cdt).at[:D, :H].set(w1p)
        w2p = jnp.zeros((Hp, Dp), cdt).at[:H, :D].set(w2p)
        b1p = jnp.zeros((1, Hp), cdt).at[:, :H].set(b1p)
        b2p = jnp.zeros((1, Dp), cdt).at[:, :D].set(b2p)

    # Large row (M) tile, 256-multiple (full MXU M passes), 16-sublane aligned.
    # The last tile may be partial (pl.cdiv grid) -- no padded activation copy.
    TM = min(_round_up(block_rows, 256), _round_up(rows, 16))

    # Generation-aware VMEM policy: ~100 MiB on 128 MiB parts (v5e/v6e),
    # ~50 MiB on 64 MiB parts (v7x), with headroom for Mosaic scratch.
    try:
        phys_vmem = int(pltpu.get_tpu_info().vmem_capacity_bytes)
    except Exception:
        phys_vmem = 128 * 2**20
    vmem_limit = min(int(0.78 * phys_vmem), 100 * 2**20)
    budget = int(0.85 * vmem_limit)

    def resident_need(tm):
        return (4 * tm * Dp * isz                     # double-buffered x + out tiles
                + (2 * Dp * Hp + Hp + Dp) * isz       # resident W1/W2/b1/b2
                + tm * Hp * (4 + isz)                 # f32 hidden temp + GELU cast
                + tm * Dp * 4)                        # f32 output temp

    def hslab_need(tm, th):
        return (4 * tm * Dp * isz                     # double-buffered x + out tiles
                + 2 * (Dp * th + th * Dp + th) * isz  # double-buffered W1/W2/b1 slabs
                + Dp * isz                            # resident b2
                + tm * Dp * 4                         # f32 accumulator scratch
                + tm * th * (4 + isz))                # f32 hidden temp + GELU cast

    use_hslab = force_hslab or resident_need(TM) > budget

    cost = pl.CostEstimate(
        flops=4 * rows * Dp * Hp,                     # two matmuls
        transcendentals=rows * Hp,                    # tanh in GELU
        bytes_accessed=(2 * rows * Dp + 2 * Dp * Hp + Hp + Dp) * isz,
    )
    vmem_spec = pl.BlockSpec(memory_space=pltpu.MemorySpace.VMEM)

    if not use_hslab:
        # Path A: weights fully resident in VMEM, single (parallel) row-tile axis.
        n_rows_t = pl.cdiv(rows, TM)
        out = pl.pallas_call(
            functools.partial(_ffn_resident_kernel, gelu_dtype=gelu_dtype),
            out_shape=jax.ShapeDtypeStruct((rows, Dp), out_dtype),
            grid_spec=pltpu.PrefetchScalarGridSpec(
                num_scalar_prefetch=0,
                grid=(n_rows_t,),
                in_specs=[
                    pl.BlockSpec((TM, Dp), lambda i: (i, 0)),   # token row tile
                    vmem_spec,                                  # W1 (resident)
                    vmem_spec,                                  # b1
                    vmem_spec,                                  # W2
                    vmem_spec,                                  # b2
                ],
                out_specs=pl.BlockSpec((TM, Dp), lambda i: (i, 0)),
            ),
            compiler_params=pltpu.CompilerParams(
                dimension_semantics=("parallel",),
                vmem_limit_bytes=vmem_limit,
            ),
            cost_estimate=cost,
        )(xf, w1p, b1p, w2p, b2p)
    else:
        # Path B: H-slab reduction (weights too big for resident VMEM, e.g. v7x).
        while TM > 128 and hslab_need(TM, 128) > budget:
            TM = max(128, TM // 2)
        n_rows_t = pl.cdiv(rows, TM)

        if hslab_th is not None:
            TH = int(hslab_th)
        else:
            TH = 128
            for cand in range(Hp, 127, -128):         # largest 128-multiple divisor
                if Hp % cand == 0 and hslab_need(TM, cand) <= budget:
                    TH = cand
                    break
        assert Hp % TH == 0 and TH % 128 == 0
        n_h = Hp // TH

        out = pl.pallas_call(
            functools.partial(_ffn_hslab_kernel, gelu_dtype=gelu_dtype),
            out_shape=jax.ShapeDtypeStruct((rows, Dp), out_dtype),
            grid_spec=pltpu.PrefetchScalarGridSpec(
                num_scalar_prefetch=0,
                grid=(n_rows_t, n_h),
                in_specs=[
                    pl.BlockSpec((TM, Dp), lambda i, k: (i, 0)),  # token row tile
                    pl.BlockSpec((Dp, TH), lambda i, k: (0, k)),  # W1 slab
                    pl.BlockSpec((1, TH), lambda i, k: (0, k)),   # b1 slab
                    pl.BlockSpec((TH, Dp), lambda i, k: (k, 0)),  # W2 slab
                    vmem_spec,                                    # b2 (resident)
                ],
                out_specs=pl.BlockSpec((TM, Dp), lambda i, k: (i, 0)),
                scratch_shapes=[pltpu.VMEM((TM, Dp), jnp.float32)],
            ),
            compiler_params=pltpu.CompilerParams(
                dimension_semantics=("parallel", "arbitrary"),
                vmem_limit_bytes=vmem_limit,
            ),
            cost_estimate=cost,
        )(xf, w1p, b1p, w2p, b2p)

    y = out[:, :D] if Dp != D else out
    return y.reshape(B, S, D)


def reference_chunk_ffn(x, w1, b1, w2, b2, *, chunks):
    """Pure-JAX f32 reference mirroring the PyTorch Chunk.forward semantics."""
    x = x.astype(jnp.float32)
    w1 = w1.astype(jnp.float32)
    b1 = b1.astype(jnp.float32)
    w2 = w2.astype(jnp.float32)
    b2 = b2.astype(jnp.float32)
    pieces = [x] if chunks == 1 else jnp.array_split(x, chunks, axis=1)
    outs = []
    for c in pieces:
        h = _gelu_tanh(c @ w1 + b1)
        outs.append(h @ w2 + b2)
    return jnp.concatenate(outs, axis=1)


if __name__ == "__main__":
    B, S, D, H = 2, 16, 32, 64
    CHUNKS = 2

    key = jax.random.PRNGKey(0)
    kx, k1, k2, k3, k4 = jax.random.split(key, 5)

    x = jax.random.normal(kx, (B, S, D), dtype=jnp.float32)
    # Deterministic parameter init (synthetic weights, no checkpoint).
    w1 = jax.random.normal(k1, (D, H), dtype=jnp.float32) / math.sqrt(D)
    b1 = jax.random.normal(k2, (H,), dtype=jnp.float32) * 0.01
    w2 = jax.random.normal(k3, (H, D), dtype=jnp.float32) / math.sqrt(H)
    b2 = jax.random.normal(k4, (D,), dtype=jnp.float32) * 0.01

    ref = reference_chunk_ffn(x, w1, b1, w2, b2, chunks=CHUNKS)

    # 1) f32 resident-weight path: tight numerical check.
    out_f32 = jax.block_until_ready(chunked_ffn(x, w1, b1, w2, b2, chunks=CHUNKS))
    assert out_f32.shape == (B, S, D)
    assert jnp.allclose(out_f32, ref, atol=3e-4, rtol=3e-4), "f32 mismatch vs reference"

    # 2) bf16 path (production dtype): f32 accumulation, bf16 GELU, loose check.
    out_bf16 = jax.block_until_ready(
        chunked_ffn(
            x.astype(jnp.bfloat16),
            w1.astype(jnp.bfloat16),
            b1.astype(jnp.bfloat16),
            w2.astype(jnp.bfloat16),
            b2.astype(jnp.bfloat16),
            chunks=CHUNKS,
        )
    )
    assert out_bf16.shape == (B, S, D)
    assert jnp.allclose(out_bf16.astype(jnp.float32), ref, atol=0.1, rtol=0.1), \
        "bf16 mismatch vs reference"

    # 3) H-slab reduction path (v7x / large-H path), forced with multiple slabs.
    H2 = 320  # pads to Hp=384 -> 3 slabs of 128
    k5, k6 = jax.random.split(k4)
    w1b = jax.random.normal(k5, (D, H2), dtype=jnp.float32) / math.sqrt(D)
    b1b = jnp.zeros((H2,), jnp.float32)
    w2b = jax.random.normal(k6, (H2, D), dtype=jnp.float32) / math.sqrt(H2)
    b2b = jnp.zeros((D,), jnp.float32)
    ref2 = reference_chunk_ffn(x, w1b, b1b, w2b, b2b, chunks=CHUNKS)
    out_hslab = jax.block_until_ready(
        chunked_ffn(x, w1b, b1b, w2b, b2b, chunks=CHUNKS,
                    force_hslab=True, hslab_th=128)
    )
    assert out_hslab.shape == (B, S, D)
    assert jnp.allclose(out_hslab, ref2, atol=3e-4, rtol=3e-4), \
        "H-slab path mismatch vs reference"

    print("KERNEL_OK")
</pallas_src>

<mosaic_0001>
module attributes {stable_mosaic.version = 11 : i64} {
  func.func @_ffn_resident_kernel(%arg0: i32, %arg1: memref<32x128xf32, #tpu.memory_space<vmem>>, %arg2: memref<128x128xf32, #tpu.memory_space<vmem>>, %arg3: memref<1x128xf32, #tpu.memory_space<vmem>>, %arg4: memref<128x128xf32, #tpu.memory_space<vmem>>, %arg5: memref<1x128xf32, #tpu.memory_space<vmem>>, %arg6: memref<32x128xf32, #tpu.memory_space<vmem>>) attributes {dimension_semantics = [#tpu.dimension_semantics<parallel>], iteration_bounds = array<i64: 1>, scalar_prefetch = 0 : i64, scratch_operands = 0 : i64, tpu.core_type = #tpu.core_type<tc>, window_params = [{transform_indices = @transform_0, window_bounds = array<i64: 32, 128>}, {pipeline_mode = #tpu.pipeline_mode<synchronous>, transform_indices = @transform_1, window_bounds = array<i64: 128, 128>}, {pipeline_mode = #tpu.pipeline_mode<synchronous>, transform_indices = @transform_2, window_bounds = array<i64: 1, 128>}, {pipeline_mode = #tpu.pipeline_mode<synchronous>, transform_indices = @transform_3, window_bounds = array<i64: 128, 128>}, {pipeline_mode = #tpu.pipeline_mode<synchronous>, transform_indices = @transform_4, window_bounds = array<i64: 1, 128>}, {transform_indices = @transform_5, window_bounds = array<i64: 32, 128>}]} {
    %c0 = arith.constant 0 : index
    %c0_0 = arith.constant 0 : index
    %0 = vector.load %arg1[%c0, %c0_0] : memref<32x128xf32, #tpu.memory_space<vmem>>, vector<32x128xf32>
    %c0_1 = arith.constant 0 : index
    %c0_2 = arith.constant 0 : index
    %1 = vector.load %arg2[%c0_1, %c0_2] : memref<128x128xf32, #tpu.memory_space<vmem>>, vector<128x128xf32>
    %cst = arith.constant dense<0.000000e+00> : vector<32x128xf32>
    %2 = tpu.matmul %0, %1, %cst {dimension_numbers = #tpu.dot_dimension_numbers<[1], [0], [0], [1], [0, 0, 1, 1], [], []>} : vector<32x128xf32>, vector<128x128xf32>, vector<32x128xf32> -> vector<32x128xf32>
    %c0_3 = arith.constant 0 : index
    %c0_4 = arith.constant 0 : index
    %3 = vector.load %arg3[%c0_3, %c0_4] : memref<1x128xf32, #tpu.memory_space<vmem>>, vector<1x128xf32>
    %4 = vector.broadcast %3 : vector<1x128xf32> to vector<32x128xf32>
    %5 = arith.addf %2, %4 : vector<32x128xf32>
    %cst_5 = arith.constant 5.000000e-01 : f32
    %6 = vector.broadcast %cst_5 : f32 to vector<32x128xf32>
    %7 = arith.mulf %6, %5 : vector<32x128xf32>
    %cst_6 = arith.constant 4.471500e-02 : f32
    %8 = vector.broadcast %cst_6 : f32 to vector<32x128xf32>
    %9 = arith.mulf %8, %5 : vector<32x128xf32>
    %10 = arith.mulf %9, %5 : vector<32x128xf32>
    %11 = arith.mulf %10, %5 : vector<32x128xf32>
    %12 = arith.addf %5, %11 : vector<32x128xf32>
    %cst_7 = arith.constant 0.797884583 : f32
    %13 = vector.broadcast %cst_7 : f32 to vector<32x128xf32>
    %14 = arith.mulf %13, %12 : vector<32x128xf32>
    %15 = math.tanh %14 : vector<32x128xf32>
    %cst_8 = arith.constant 1.000000e+00 : f32
    %16 = vector.broadcast %cst_8 : f32 to vector<32x128xf32>
    %17 = arith.addf %16, %15 : vector<32x128xf32>
    %18 = arith.mulf %7, %17 : vector<32x128xf32>
    %c0_9 = arith.constant 0 : index
    %c0_10 = arith.constant 0 : index
    %19 = vector.load %arg4[%c0_9, %c0_10] : memref<128x128xf32, #tpu.memory_space<vmem>>, vector<128x128xf32>
    %cst_11 = arith.constant dense<0.000000e+00> : vector<32x128xf32>
    %20 = tpu.matmul %18, %19, %cst_11 {dimension_numbers = #tpu.dot_dimension_numbers<[1], [0], [0], [1], [0, 0, 1, 1], [], []>} : vector<32x128xf32>, vector<128x128xf32>, vector<32x128xf32> -> vector<32x128xf32>
    %c0_12 = arith.constant 0 : index
    %c0_13 = arith.constant 0 : index
    %21 = vector.load %arg5[%c0_12, %c0_13] : memref<1x128xf32, #tpu.memory_space<vmem>>, vector<1x128xf32>
    %22 = vector.broadcast %21 : vector<1x128xf32> to vector<32x128xf32>
    %23 = arith.addf %20, %22 : vector<32x128xf32>
    %c0_14 = arith.constant 0 : index
    %c0_15 = arith.constant 0 : index
    %24 = vector.load %arg6[%c0_14, %c0_15] : memref<32x128xf32, #tpu.memory_space<vmem>>, vector<32x128xf32>
    tpu.vector_store %arg6[%c0_14, %c0_15], %23 {strides = array<i32>} : memref<32x128xf32, #tpu.memory_space<vmem>>, vector<32x128xf32>,
    return
  }
  func.func @transform_0(%arg0: i32) -> (i32, i32) {
    %c0_i32 = arith.constant 0 : i32
    %c0_i32_0 = arith.constant 0 : i32
    return %arg0, %c0_i32 : i32, i32
  }
  func.func @transform_1(%arg0: i32) -> (i32, i32) {
    %c0_i32 = arith.constant 0 : i32
    %c0_i32_0 = arith.constant 0 : i32
    %c0_i32_1 = arith.constant 0 : i32
    return %c0_i32, %c0_i32_0 : i32, i32
  }
  func.func @transform_2(%arg0: i32) -> (i32, i32) {
    %c0_i32 = arith.constant 0 : i32
    %c0_i32_0 = arith.constant 0 : i32
    %c0_i32_1 = arith.constant 0 : i32
    return %c0_i32, %c0_i32_0 : i32, i32
  }
  func.func @transform_3(%arg0: i32) -> (i32, i32) {
    %c0_i32 = arith.constant 0 : i32
    %c0_i32_0 = arith.constant 0 : i32
    %c0_i32_1 = arith.constant 0 : i32
    return %c0_i32, %c0_i32_0 : i32, i32
  }
  func.func @transform_4(%arg0: i32) -> (i32, i32) {
    %c0_i32 = arith.constant 0 : i32
    %c0_i32_0 = arith.constant 0 : i32
    %c0_i32_1 = arith.constant 0 : i32
    return %c0_i32, %c0_i32_0 : i32, i32
  }
  func.func @transform_5(%arg0: i32) -> (i32, i32) {
    %c0_i32 = arith.constant 0 : i32
    %c0_i32_0 = arith.constant 0 : i32
    return %arg0, %c0_i32 : i32, i32
  }
}

</mosaic_0001>

<llo_original>
// kernel: tpu_custom_call.1
$region0: #{tpu_custom_call.1}
  #allocation0 [shape = 'u32[]', space=smem, size = 0x4, offset = 0x4, fixed_abs, tag = 'smem constant byte address 0x4 - core index']
  #allocation1 [shape = 'u32[72,128]{1,0:T(1,128)}', space=vmem, size = 0x9000, scoped, tag = 'internal scratch']
  %s0 = inlined_call_operand.hbm [shape: f32[32,128], index: 0, kind: input, shape index: {}]
  %s1 = inlined_call_operand.hbm [shape: f32[128,128], index: 1, kind: input, shape index: {}]
  %s2 = inlined_call_operand.vmem [shape: f32[1,128], index: 2, kind: input, shape index: {}]
  %s3 = inlined_call_operand.hbm [shape: f32[128,128], index: 3, kind: input, shape index: {}]
  %s4 = inlined_call_operand.vmem [shape: f32[1,128], index: 4, kind: input, shape index: {}]
  %s5 = inlined_call_operand.hbm [shape: f32[32,128], index: 5, kind: output, shape index: {}]
  %s6 = sld [smem:[#allocation0]]
  $region42: #{tpu_custom_call.1} parent=0
    _
  %s8 = ssub.s32 1, %s6
  %s9 = scalar_select 0, %s8, %s6
  $region1: #{tpu_custom_call.1} parent=0
    #allocation2 [shape = 'u8[16384]{0}', space=vmem, size = 0x4000, scoped, tag = 'input window, operand 0, single buffered']
    #allocation3 [shape = 's32[1]{0}', space=sflag, size = 0x4, scoped, tag = 'scoped memory for tpu_custom_call.1']
    #allocation4 [shape = 's32[1]{0}', space=sflag, size = 0x4, scoped, tag = 'scoped memory for tpu_custom_call.1']
    #allocation5 [shape = 'u8[65536]{0}', space=vmem, size = 0x10000, scoped, tag = 'input window, operand 1, single buffered']
    #allocation6 [shape = 's32[1]{0}', space=sflag, size = 0x4, scoped, tag = 'scoped memory for tpu_custom_call.1']
    #allocation7 [shape = 'u8[65536]{0}', space=vmem, size = 0x10000, scoped, tag = 'input window, operand 3, single buffered']
    #allocation8 [shape = 'u8[16384]{0}', space=vmem, size = 0x4000, scoped, tag = 'output window, operand 0, single buffered']
    %10 = vsyncpa [#allocation3], 0
    %11 = vsyncpa [#allocation6], 0
    %12 = vsyncpa [#allocation4], 0
    // Predicated region
    $region2: #{tpu_custom_call.1} parent=1 // pred_check
      _
    $region3: #{tpu_custom_call.1} parent=1 // pred_check_branch
      %14 = sbr.rel (0) target = $region5
    $region4: #{tpu_custom_call.1} parent=1 // pred_region
      %16 = vsyncadd [#allocation3], 0
      %s17 = sshll.u32 %s0, 4
      %s18 = int_to_ptr.hbm [resolvable:$true] %s17
      %s19 = sshll.u32 [#allocation2], 4
      %s20 = int_to_ptr.vmem [resolvable:$true] %s19
      %25 = dma.hbm_to_vmem [thread:$0]  %s18, 512, %s20, [#allocation3], 128, 128, 8
    $region5: #{tpu_custom_call.1} parent=1 // pred_fallthru
      _
    // Predicated region
    $region6: #{tpu_custom_call.1} parent=1 // pred_check
      _
    $region7: #{tpu_custom_call.1} parent=1 // pred_check_branch
      %27 = sbr.rel (0) target = $region9
    $region8: #{tpu_custom_call.1} parent=1 // pred_region
      %29 = vsyncadd [#allocation6], 0
      %s30 = sshll.u32 %s1, 4
      %s31 = int_to_ptr.hbm [resolvable:$true] %s30
      %s32 = sshll.u32 [#allocation5], 4
      %s33 = int_to_ptr.vmem [resolvable:$true] %s32
      %38 = dma.hbm_to_vmem [thread:$0]  %s31, 2048, %s33, [#allocation6], 128, 128, 8
    $region9: #{tpu_custom_call.1} parent=1 // pred_fallthru
      _
    // Predicated region
    $region10: #{tpu_custom_call.1} parent=1 // pred_check
      _
    $region11: #{tpu_custom_call.1} parent=1 // pred_check_branch
      %40 = sbr.rel (0) target = $region13
    $region12: #{tpu_custom_call.1} parent=1 // pred_region
      _
    $region13: #{tpu_custom_call.1} parent=1 // pred_fallthru
      _
    // Predicated region
    $region14: #{tpu_custom_call.1} parent=1 // pred_check
      _
    $region15: #{tpu_custom_call.1} parent=1 // pred_check_branch
      %42 = sbr.rel (0) target = $region17
    $region16: #{tpu_custom_call.1} parent=1 // pred_region
      %44 = vsyncadd [#allocation6], 0
      %s45 = sshll.u32 %s3, 4
      %s46 = int_to_ptr.hbm [resolvable:$true] %s45
      %s47 = sshll.u32 [#allocation7], 4
      %s48 = int_to_ptr.vmem [resolvable:$true] %s47
      %53 = dma.hbm_to_vmem [thread:$0]  %s46, 2048, %s48, [#allocation6], 128, 128, 8
    $region17: #{tpu_custom_call.1} parent=1 // pred_fallthru
      _
    // Predicated region
    $region18: #{tpu_custom_call.1} parent=1 // pred_check
      _
    $region19: #{tpu_custom_call.1} parent=1 // pred_check_branch
      %55 = sbr.rel (0) target = $region21
    $region20: #{tpu_custom_call.1} parent=1 // pred_region
      _
    $region21: #{tpu_custom_call.1} parent=1 // pred_fallthru
      _
    // Predicated region
    $region22: #{tpu_custom_call.1} parent=1 // pred_check
      _
    $region23: #{tpu_custom_call.1} parent=1 // pred_check_branch
      %57 = sbr.rel (0) target = $region25
    $region24: #{tpu_custom_call.1} parent=1 // pred_region
      %59 = dma.done [#allocation3], 512
    $region25: #{tpu_custom_call.1} parent=1 // pred_fallthru
      _
    // Predicated region
    $region26: #{tpu_custom_call.1} parent=1 // pred_check
      _
    $region27: #{tpu_custom_call.1} parent=1 // pred_check_branch
      %61 = sbr.rel (0) target = $region29
    $region28: #{tpu_custom_call.1} parent=1 // pred_region
      %63 = dma.done [#allocation6], 2048
    $region29: #{tpu_custom_call.1} parent=1 // pred_fallthru
      _
    // Predicated region
    $region30: #{tpu_custom_call.1} parent=1 // pred_check
      _
    $region31: #{tpu_custom_call.1} parent=1 // pred_check_branch
      %65 = sbr.rel (0) target = $region33
    $region32: #{tpu_custom_call.1} parent=1 // pred_region
      %67 = dma.done [#allocation6], 2048
    $region33: #{tpu_custom_call.1} parent=1 // pred_fallthru
      _
    %v68 = vld [vmem:[#allocation2] sm:$0xff]
    %v69 = vld [vmem:[#allocation2 + $0x8] sm:$0xff]
    %v70 = vld [vmem:[#allocation2 + $0x10] sm:$0xff]
    %v71 = vld [vmem:[#allocation2 + $0x18] sm:$0xff]
    %v72 = vld [vmem:[#allocation5] sm:$0xff]
    %v73 = vld [vmem:[#allocation5 + $0x8] sm:$0xff]
    %v74 = vld [vmem:[#allocation5 + $0x10] sm:$0xff]
    %v75 = vld [vmem:[#allocation5 + $0x18] sm:$0xff]
    %v76 = vld [vmem:[#allocation5 + $0x20] sm:$0xff]
    %v77 = vld [vmem:[#allocation5 + $0x28] sm:$0xff]
    %v78 = vld [vmem:[#allocation5 + $0x30] sm:$0xff]
    %v79 = vld [vmem:[#allocation5 + $0x38] sm:$0xff]
    %v80 = vld [vmem:[#allocation5 + $0x40] sm:$0xff]
    %v81 = vld [vmem:[#allocation5 + $0x48] sm:$0xff]
    %v82 = vld [vmem:[#allocation5 + $0x50] sm:$0xff]
    %v83 = vld [vmem:[#allocation5 + $0x58] sm:$0xff]
    %v84 = vld [vmem:[#allocation5 + $0x60] sm:$0xff]
    %v85 = vld [vmem:[#allocation5 + $0x68] sm:$0xff]
    %v86 = vld [vmem:[#allocation5 + $0x70] sm:$0xff]
    %v87 = vld [vmem:[#allocation5 + $0x78] sm:$0xff]
    %v88 = vld [vmem:[%s2] sm:$0x1]
    %v90 = vperm.slane %v88, 0
    %92 = vmatpush.msra.mxu0 %v87
    %93 = vmatpush.msra.mxu0 %v86
    %94 = vmatpush.msra.mxu0 %v85
    %95 = vmatpush.msra.mxu0 %v84
    %96 = vmatpush.msra.mxu0 %v83
    %97 = vmatpush.msra.mxu0 %v82
    %98 = vmatpush.msra.mxu0 %v81
    %99 = vmatpush.msra.mxu0 %v80
    %100 = vmatpush.msra.mxu0 %v79
    %101 = vmatpush.msra.mxu0 %v78
    %102 = vmatpush.msra.mxu0 %v77
    %103 = vmatpush.msra.mxu0 %v76
    %104 = vmatpush.msra.mxu0 %v75
    %105 = vmatpush.msra.mxu0 %v74
    %106 = vmatpush.msra.mxu0 %v73
    %107 = vmatpush.msra.mxu0 %v72
    %108 = vmatmul.f32.gmra.mxu0 %v68
    %v109 = vpop.f32.mrf.mxu0
    %v110 = vadd.f32 %v90, %v109
    %111 = vmatmul.f32.gmra.mxu0 %v69
    %v112 = vpop.f32.mrf.mxu0
    %v113 = vadd.f32 %v90, %v112
    %114 = vmatmul.f32.gmra.mxu0 %v70
    %v115 = vpop.f32.mrf.mxu0
    %v116 = vadd.f32 %v90, %v115
    %117 = vmatmul.f32.gmra.mxu0 %v71
    %v118 = vpop.f32.mrf.mxu0
    %v119 = vadd.f32 %v90, %v118
    %120 = vdwg.mxu0
    %v121 = vmul.f32 %v110, 0.5
    %v122 = vmul.f32 %v113, 0.5
    %v123 = vmul.f32 %v116, 0.5
    %v124 = vmul.f32 %v119, 0.5
    %v125 = vmul.f32 %v110, 0.044715
    %v126 = vmul.f32 %v113, 0.044715
    %v127 = vmul.f32 %v116, 0.044715
    %v128 = vmul.f32 %v119, 0.044715
    %v129 = vmul.f32 %v125, %v110
    %v130 = vmul.f32 %v126, %v113
    %v131 = vmul.f32 %v127, %v116
    %v132 = vmul.f32 %v128, %v119
    %v133 = vmul.f32 %v129, %v110
    %v134 = vmul.f32 %v130, %v113
    %v135 = vmul.f32 %v131, %v116
    %v136 = vmul.f32 %v132, %v119
    %v137 = vadd.f32 %v110, %v133
    %v138 = vadd.f32 %v113, %v134
    %v139 = vadd.f32 %v116, %v135
    %v140 = vadd.f32 %v119, %v136
    %v141 = vmul.f32 %v137, 0.7978846
    %v142 = vmul.f32 %v138, 0.7978846
    %v143 = vmul.f32 %v139, 0.7978846
    %v144 = vmul.f32 %v140, 0.7978846
    %v145 = vtanh.pop %v141
    %v146 = vtanh.pop %v142
    %v147 = vtanh.pop %v143
    %v148 = vtanh.pop %v144
    %v149 = vadd.f32 %v145, 1.0
    %v150 = vadd.f32 %v146, 1.0
    %v151 = vadd.f32 %v147, 1.0
    %v152 = vadd.f32 %v148, 1.0
    %v153 = vmul.f32 %v121, %v149
    %v154 = vmul.f32 %v122, %v150
    %v155 = vmul.f32 %v123, %v151
    %v156 = vmul.f32 %v124, %v152
    %v157 = vld [vmem:[#allocation7] sm:$0xff]
    %v158 = vld [vmem:[#allocation7 + $0x8] sm:$0xff]
    %v159 = vld [vmem:[#allocation7 + $0x10] sm:$0xff]
    %v160 = vld [vmem:[#allocation7 + $0x18] sm:$0xff]
    %v161 = vld [vmem:[#allocation7 + $0x20] sm:$0xff]
    %v162 = vld [vmem:[#allocation7 + $0x28] sm:$0xff]
    %v163 = vld [vmem:[#allocation7 + $0x30] sm:$0xff]
    %v164 = vld [vmem:[#allocation7 + $0x38] sm:$0xff]
    %v165 = vld [vmem:[#allocation7 + $0x40] sm:$0xff]
    %v166 = vld [vmem:[#allocation7 + $0x48] sm:$0xff]
    %v167 = vld [vmem:[#allocation7 + $0x50] sm:$0xff]
    %v168 = vld [vmem:[#allocation7 + $0x58] sm:$0xff]
    %v169 = vld [vmem:[#allocation7 + $0x60] sm:$0xff]
    %v170 = vld [vmem:[#allocation7 + $0x68] sm:$0xff]
    %v171 = vld [vmem:[#allocation7 + $0x70] sm:$0xff]
    %v172 = vld [vmem:[#allocation7 + $0x78] sm:$0xff]
    %v173 = vld [vmem:[%s4] sm:$0x1]
    %v175 = vperm.slane %v173, 0
    %177 = vmatpush.msra.mxu0 %v172
    %178 = vmatpush.msra.mxu0 %v171
    %179 = vmatpush.msra.mxu0 %v170
    %180 = vmatpush.msra.mxu0 %v169
    %181 = vmatpush.msra.mxu0 %v168
    %182 = vmatpush.msra.mxu0 %v167
    %183 = vmatpush.msra.mxu0 %v166
    %184 = vmatpush.msra.mxu0 %v165
    %185 = vmatpush.msra.mxu0 %v164
    %186 = vmatpush.msra.mxu0 %v163
    %187 = vmatpush.msra.mxu0 %v162
    %188 = vmatpush.msra.mxu0 %v161
    %189 = vmatpush.msra.mxu0 %v160
    %190 = vmatpush.msra.mxu0 %v159
    %191 = vmatpush.msra.mxu0 %v158
    %192 = vmatpush.msra.mxu0 %v157
    %193 = vmatmul.f32.gmra.mxu0 %v153
    %v194 = vpop.f32.mrf.mxu0
    %v195 = vadd.f32 %v175, %v194
    %196 = vmatmul.f32.gmra.mxu0 %v154
    %v197 = vpop.f32.mrf.mxu0
    %v198 = vadd.f32 %v175, %v197
    %199 = vmatmul.f32.gmra.mxu0 %v155
    %v200 = vpop.f32.mrf.mxu0
    %v201 = vadd.f32 %v175, %v200
    %202 = vmatmul.f32.gmra.mxu0 %v156
    %v203 = vpop.f32.mrf.mxu0
    %v204 = vadd.f32 %v175, %v203
    %205 = vdwg.mxu0
    %206 = vst [vmem:[#allocation8] sm:$0xff] %v195
    %207 = vst [vmem:[#allocation8 + $0x8] sm:$0xff] %v198
    %208 = vst [vmem:[#allocation8 + $0x10] sm:$0xff] %v201
    %209 = vst [vmem:[#allocation8 + $0x18] sm:$0xff] %v204
    // Predicated region
    $region34: #{tpu_custom_call.1} parent=1 // pred_check
      _
    $region35: #{tpu_custom_call.1} parent=1 // pred_check_branch
      %211 = sbr.rel (0) target = $region37
    $region36: #{tpu_custom_call.1} parent=1 // pred_region
      %213 = vsyncadd [#allocation4], 0
      %s214 = sshll.u32 [#allocation8], 4
      %s215 = int_to_ptr.vmem [resolvable:$true] %s214
      %s216 = sshll.u32 %s5, 4
      %s217 = int_to_ptr.hbm [resolvable:$true] %s216
      %222 = dma.vmem_to_hbm [thread:$0]  %s215, 512, %s217, [#allocation4], 128, 128, 8
    $region37: #{tpu_custom_call.1} parent=1 // pred_fallthru
      _
    // Predicated region
    $region38: #{tpu_custom_call.1} parent=1 // pred_check
      _
    $region39: #{tpu_custom_call.1} parent=1 // pred_check_branch
      %224 = sbr.rel (0) target = $region41
    $region40: #{tpu_custom_call.1} parent=1 // pred_region
      %226 = dma.done [#allocation4], 512
    $region41: #{tpu_custom_call.1} parent=1 // pred_fallthru
      _
    %227 = vsyncpa [#allocation3], 1
    %228 = vsyncpa [#allocation6], 1
    %229 = vsyncpa [#allocation4], 1

</llo_original>
